<compile_context>
chip_gen: v7x
topology: tpu7x:2x2x1
jax: 0.10.0
libtpu: 0.0.40
codegen_flags: <defaults>
</compile_context>

<pallas_src>
import jax
import jax.numpy as jnp
from jax.experimental import pallas as pl
from jax.experimental.pallas import tpu as pltpu


def _round_up(x, m):
    return ((x + m - 1) // m) * m


# ---------------------------------------------------------------------------
# Kernel 1 (training hot path): out[r] = bf16(x[r]) @ W + b + pos[r]
#   x rows are the *already gathered* unmasked patches; pos rows are their
#   per-row positional embeddings (needed as a separate output anyway).
# ---------------------------------------------------------------------------
def _proj_rows_kernel(x_ref, w_ref, b_ref, pos_ref, o_ref):
    # x_ref:   (T, P)  f32   -> cast to bf16 in-kernel (no wrapper HBM round trip)
    # w_ref:   (P, D)  bf16  shared projection weight (resident)
    # b_ref:   (1, D)  f32   shared projection bias (resident)
    # pos_ref: (T, D)  f32   per-row positional embedding
    # o_ref:   (T, D)  f32
    xb = x_ref[...].astype(jnp.bfloat16)
    proj = jnp.dot(xb, w_ref[...], preferred_element_type=jnp.float32)
    o_ref[...] = proj + pos_ref[...] + b_ref[...]


def project_rows_add(x_rows, w_bf16, b, pos_rows, *, target_rows=2048):
    """x_rows: (R, P) f32, w_bf16: (P, D) bf16, b: (D,), pos_rows: (R, D) -> (R, D) f32."""
    R0, P = x_rows.shape
    D = w_bf16.shape[1]

    # Keep the sublane (row) dim a multiple of 8; pad the rare ragged row counts.
    R = _round_up(R0, 8)
    if R != R0:
        x_rows = jnp.pad(x_rows, ((0, R - R0), (0, 0)))
        pos_rows = jnp.pad(pos_rows, ((0, R - R0), (0, 0)))

    b2 = b.reshape(1, D).astype(jnp.float32)

    # cdiv-based row tiles targeting ~2048 rows, but always >=2 grid steps when R
    # allows (v7x second TensorCore). Max tile memory (2048 rows of x+pos+out,
    # double-buffered) ~ 6 MiB -> fits v5e's 16 MiB scoped-VMEM default as-is.
    tile = min(target_rows, max(8, _round_up(pl.cdiv(R, 2), 8)))
    tile = min(tile, R)
    grid = (pl.cdiv(R, tile),)

    out = pl.pallas_call(
        _proj_rows_kernel,
        out_shape=jax.ShapeDtypeStruct((R, D), jnp.float32),
        grid_spec=pltpu.PrefetchScalarGridSpec(
            num_scalar_prefetch=0,
            grid=grid,
            in_specs=[
                pl.BlockSpec((tile, P), lambda i: (i, 0)),   # P == full extent (108)
                pl.BlockSpec((P, D), lambda i: (0, 0)),      # resident weight
                pl.BlockSpec((1, D), lambda i: (0, 0)),      # resident bias
                pl.BlockSpec((tile, D), lambda i: (i, 0)),   # per-row pos
            ],
            out_specs=pl.BlockSpec((tile, D), lambda i: (i, 0)),
        ),
        compiler_params=pltpu.CompilerParams(
            dimension_semantics=("parallel",)),
    )(x_rows, w_bf16, b2, pos_rows)
    return out[:R0] if R != R0 else out


# ---------------------------------------------------------------------------
# Kernel 2 (downstream path): out[b, m] = bf16(x[b, m]) @ W + (pos[m] + b)
#   pos is passed un-broadcast as an (M, D) table (bias folded in) and broadcast
#   over the `reps` batch copies inside the tile (pure sublane regroup).
# ---------------------------------------------------------------------------
def _proj_bcast_kernel(x_ref, w_ref, bpos_ref, o_ref):
    xb = x_ref[...].astype(jnp.bfloat16)
    proj = jnp.dot(xb, w_ref[...], preferred_element_type=jnp.float32)
    T, D = o_ref.shape
    M = bpos_ref.shape[0]
    reps = T // M                                            # static
    o_ref[...] = (proj.reshape(reps, M, D) + bpos_ref[...][None]).reshape(T, D)


def project_all_add_pos(x, w_bf16, b, pos_table, *, target_rows=2048):
    """Downstream path: project every patch. x: (B, M, P) -> (B, M, D) f32."""
    B, M, P = x.shape
    D = w_bf16.shape[1]
    R = B * M
    xf = x.reshape(R, P)

    reps = max(1, min(B, target_rows // M))
    if B > 1:
        reps = min(reps, pl.cdiv(B, 2))      # >=2 grid steps -> v7x dual TensorCore
    tile = reps * M

    if tile % 8 != 0 and tile != R:
        # M not a sublane multiple: fall back to bounded per-row-pos tiling instead
        # of one unbounded full-extent block (latent VMEM hazard on v7x's 64 MiB).
        pos_rows = jnp.broadcast_to(pos_table[None], (B, M, D)).reshape(R, D)
        return project_rows_add(xf, w_bf16, b, pos_rows,
                                target_rows=target_rows).reshape(B, M, D)

    bpos = (pos_table + b[None, :]).astype(jnp.float32)      # fold bias (tiny (M, D))
    grid = (pl.cdiv(B, reps),)

    out = pl.pallas_call(
        _proj_bcast_kernel,
        out_shape=jax.ShapeDtypeStruct((R, D), jnp.float32),
        grid_spec=pltpu.PrefetchScalarGridSpec(
            num_scalar_prefetch=0,
            grid=grid,
            in_specs=[
                pl.BlockSpec((tile, P), lambda i: (i, 0)),
                pl.BlockSpec((P, D), lambda i: (0, 0)),
                pl.BlockSpec((M, D), lambda i: (0, 0)),
            ],
            out_specs=pl.BlockSpec((tile, D), lambda i: (i, 0)),
        ),
        compiler_params=pltpu.CompilerParams(
            dimension_semantics=("parallel",)),
    )(xf, w_bf16, bpos)
    return out.reshape(B, M, D)


# ---------------------------------------------------------------------------
# Forward (jitted end-to-end: argsort, gathers, mask-token matvec, pallas_call)
# ---------------------------------------------------------------------------
def _forward_impl(patches, rng_key, mask_token, proj_w, proj_b, pos_emb,
                  *, num_mask, downstream):
    B, M, P = patches.shape
    pos_table = pos_emb[:M]                                   # (M, D) embedding lookup
    w_bf16 = proj_w.astype(jnp.bfloat16)                      # tiny, fused by XLA

    if downstream:
        return project_all_add_pos(patches, w_bf16, proj_b, pos_table)

    # Random masking: torch.argsort(torch.rand(B, M), dim=-1).
    rand = jax.random.uniform(rng_key, (B, M))
    rand_indices = jnp.argsort(rand, axis=-1)
    mask_indices = rand_indices[:, :num_mask]
    unmask_indices = rand_indices[:, num_mask:]

    # Gather FIRST, then project ONLY the unmasked ~25% of patches.
    unmasked_positions = jnp.take(pos_table, unmask_indices, axis=0)        # (B, Mu, D)
    masked_positions = jnp.take(pos_table, mask_indices, axis=0)            # (B, Mm, D)
    unmasked_patches = jnp.take_along_axis(
        patches, unmask_indices[:, :, None], axis=1)                        # (B, Mu, P)

    Mu = M - num_mask
    D = proj_w.shape[1]
    unmasked_embeddings = project_rows_add(
        unmasked_patches.reshape(B * Mu, P), w_bf16, proj_b,
        unmasked_positions.reshape(B * Mu, D)).reshape(B, Mu, D)

    # All mask-token rows are identical: project the single (1, P) token once (tiny
    # f32 matvec) and broadcast-add, instead of a B*num_mask-row redundant matmul.
    masked_base = mask_token @ proj_w + proj_b                              # (1, D)
    masked_embeddings = masked_positions + masked_base[None]                # (B, Mm, D)

    return (unmasked_embeddings, masked_embeddings, unmasked_positions,
            mask_indices, unmask_indices)


_forward_jit = jax.jit(_forward_impl, static_argnames=("num_mask", "downstream"))


class PatchEncoder:
    def __init__(self, key, patch_size=6, projection_dim=128,
                 mask_proportion=0.75, downstream=False):
        self.patch_size = patch_size
        self.projection_dim = projection_dim
        self.mask_proportion = mask_proportion
        self.downstream = downstream
        self.num_patches = (48 // patch_size) ** 2
        p = patch_size * patch_size * 3

        k_tok, k_w, k_b, k_pos = jax.random.split(key, 4)
        # Deterministic synthetic parameters (same shapes as the nn.Module).
        self.mask_token = jax.random.normal(k_tok, (1, p), jnp.float32)
        # nn.Linear(p, projection_dim), stored as (in, out).
        self.proj_w = jax.random.normal(k_w, (p, projection_dim), jnp.float32) * 0.02
        self.proj_b = jax.random.normal(k_b, (projection_dim,), jnp.float32) * 0.02
        # nn.Embedding(num_patches, projection_dim)
        self.pos_emb = jax.random.normal(
            k_pos, (self.num_patches, projection_dim), jnp.float32)

    def forward(self, patches, rng_key):
        num_patches = patches.shape[1]
        num_mask = int(self.mask_proportion * num_patches)
        return _forward_jit(patches, rng_key, self.mask_token, self.proj_w,
                            self.proj_b, self.pos_emb,
                            num_mask=num_mask, downstream=self.downstream)


# ---------------------------------------------------------------------------
# Pure-jnp references for correctness checks of the hot path.
# ---------------------------------------------------------------------------
def _ref_project_add(x, w, b, pos):
    return jnp.einsum("bmp,pd->bmd", x, w) + b[None, None, :] + pos[None]


if __name__ == "__main__":
    key = jax.random.PRNGKey(0)
    k_params, k_patches, k_mask = jax.random.split(key, 3)

    patch_size = 6
    projection_dim = 128
    enc = PatchEncoder(k_params, patch_size=patch_size,
                       projection_dim=projection_dim, mask_proportion=0.75)

    batch_size = 2
    num_patches = enc.num_patches            # 64
    patch_dim = patch_size * patch_size * 3  # 108
    patches = jax.random.normal(
        k_patches, (batch_size, num_patches, patch_dim), jnp.float32)

    outs = enc.forward(patches, k_mask)
    outs = jax.block_until_ready(outs)
    (unmasked_emb, masked_emb, unmasked_pos, mask_idx, unmask_idx) = outs

    num_mask = int(0.75 * num_patches)
    num_unmask = num_patches - num_mask
    assert unmasked_emb.shape == (batch_size, num_unmask, projection_dim)
    assert masked_emb.shape == (batch_size, num_mask, projection_dim)
    assert unmasked_pos.shape == (batch_size, num_unmask, projection_dim)
    assert mask_idx.shape == (batch_size, num_mask)
    assert unmask_idx.shape == (batch_size, num_unmask)

    # Reference: full projection + pos, then gather (PyTorch semantics).
    ref_full = _ref_project_add(patches, enc.proj_w, enc.proj_b,
                                enc.pos_emb[:num_patches])
    ref_unmasked = jnp.take_along_axis(ref_full, unmask_idx[:, :, None], axis=1)
    assert jnp.allclose(unmasked_emb, ref_unmasked, atol=2e-2, rtol=2e-2)

    ref_unmasked_pos = jnp.take(enc.pos_emb[:num_patches], unmask_idx, axis=0)
    assert jnp.allclose(unmasked_pos, ref_unmasked_pos)

    # Masked path matches "project every broadcast mask token" semantics.
    mask_tokens_full = jnp.broadcast_to(
        enc.mask_token[None], (batch_size, num_mask, patch_dim))
    want_masked = (jnp.einsum("bmp,pd->bmd", mask_tokens_full, enc.proj_w)
                   + enc.proj_b + jnp.take(enc.pos_emb[:num_patches], mask_idx, axis=0))
    assert jnp.allclose(masked_emb, want_masked, atol=2e-2, rtol=2e-2)

    # Downstream (project-all) kernel vs reference.
    got_all = project_all_add_pos(patches, enc.proj_w.astype(jnp.bfloat16),
                                  enc.proj_b, enc.pos_emb[:num_patches])
    got_all = jax.block_until_ready(got_all)
    assert got_all.shape == (batch_size, num_patches, projection_dim)
    assert jnp.allclose(got_all, ref_full, atol=2e-2, rtol=2e-2)

    print("KERNEL_OK")
</pallas_src>

<mosaic_0001>
module attributes {stable_mosaic.version = 11 : i64} {
  func.func @_proj_rows_kernel(%arg0: i32, %arg1: memref<16x108xf32, #tpu.memory_space<vmem>>, %arg2: memref<108x128xbf16, #tpu.memory_space<vmem>>, %arg3: memref<1x128xf32, #tpu.memory_space<vmem>>, %arg4: memref<16x128xf32, #tpu.memory_space<vmem>>, %arg5: memref<16x128xf32, #tpu.memory_space<vmem>>) attributes {dimension_semantics = [#tpu.dimension_semantics<parallel>], iteration_bounds = array<i64: 2>, scalar_prefetch = 0 : i64, scratch_operands = 0 : i64, tpu.core_type = #tpu.core_type<tc>, window_params = [{transform_indices = @transform_0, window_bounds = array<i64: 16, 108>}, {pipeline_mode = #tpu.pipeline_mode<synchronous>, transform_indices = @transform_1, window_bounds = array<i64: 108, 128>}, {pipeline_mode = #tpu.pipeline_mode<synchronous>, transform_indices = @transform_2, window_bounds = array<i64: 1, 128>}, {transform_indices = @transform_3, window_bounds = array<i64: 16, 128>}, {transform_indices = @transform_4, window_bounds = array<i64: 16, 128>}]} {
    %c0 = arith.constant 0 : index
    %c0_0 = arith.constant 0 : index
    %0 = vector.load %arg1[%c0, %c0_0] : memref<16x108xf32, #tpu.memory_space<vmem>>, vector<16x108xf32>
    %1 = arith.truncf %0 : vector<16x108xf32> to vector<16x108xbf16>
    %c0_1 = arith.constant 0 : index
    %c0_2 = arith.constant 0 : index
    %2 = vector.load %arg2[%c0_1, %c0_2] : memref<108x128xbf16, #tpu.memory_space<vmem>>, vector<108x128xbf16>
    %cst = arith.constant dense<0.000000e+00> : vector<16x128xf32>
    %3 = tpu.matmul %1, %2, %cst {dimension_numbers = #tpu.dot_dimension_numbers<[1], [0], [0], [1], [0, 0, 1, 1], [], []>} : vector<16x108xbf16>, vector<108x128xbf16>, vector<16x128xf32> -> vector<16x128xf32>
    %c0_3 = arith.constant 0 : index
    %c0_4 = arith.constant 0 : index
    %4 = vector.load %arg4[%c0_3, %c0_4] : memref<16x128xf32, #tpu.memory_space<vmem>>, vector<16x128xf32>
    %5 = arith.addf %3, %4 : vector<16x128xf32>
    %c0_5 = arith.constant 0 : index
    %c0_6 = arith.constant 0 : index
    %6 = vector.load %arg3[%c0_5, %c0_6] : memref<1x128xf32, #tpu.memory_space<vmem>>, vector<1x128xf32>
    %7 = vector.broadcast %6 : vector<1x128xf32> to vector<16x128xf32>
    %8 = arith.addf %5, %7 : vector<16x128xf32>
    %c0_7 = arith.constant 0 : index
    %c0_8 = arith.constant 0 : index
    %9 = vector.load %arg5[%c0_7, %c0_8] : memref<16x128xf32, #tpu.memory_space<vmem>>, vector<16x128xf32>
    tpu.vector_store %arg5[%c0_7, %c0_8], %8 {strides = array<i32>} : memref<16x128xf32, #tpu.memory_space<vmem>>, vector<16x128xf32>,
    return
  }
  func.func @transform_0(%arg0: i32) -> (i32, i32) {
    %c0_i32 = arith.constant 0 : i32
    %c0_i32_0 = arith.constant 0 : i32
    return %arg0, %c0_i32 : i32, i32
  }
  func.func @transform_1(%arg0: i32) -> (i32, i32) {
    %c0_i32 = arith.constant 0 : i32
    %c0_i32_0 = arith.constant 0 : i32
    %c0_i32_1 = arith.constant 0 : i32
    return %c0_i32, %c0_i32_0 : i32, i32
  }
  func.func @transform_2(%arg0: i32) -> (i32, i32) {
    %c0_i32 = arith.constant 0 : i32
    %c0_i32_0 = arith.constant 0 : i32
    %c0_i32_1 = arith.constant 0 : i32
    return %c0_i32, %c0_i32_0 : i32, i32
  }
  func.func @transform_3(%arg0: i32) -> (i32, i32) {
    %c0_i32 = arith.constant 0 : i32
    %c0_i32_0 = arith.constant 0 : i32
    return %arg0, %c0_i32 : i32, i32
  }
  func.func @transform_4(%arg0: i32) -> (i32, i32) {
    %c0_i32 = arith.constant 0 : i32
    %c0_i32_0 = arith.constant 0 : i32
    return %arg0, %c0_i32 : i32, i32
  }
}

</mosaic_0001>

<llo_original>
// kernel: _forward_impl.1
$region0: #{_forward_impl.1}
  #allocation0 [shape = 'u32[]', space=smem, size = 0x4, offset = 0x4, fixed_abs, tag = 'smem constant byte address 0x4 - core index']
  #allocation1 [shape = 'u32[144,128]{1,0:T(1,128)}', space=vmem, size = 0x12000, scoped, tag = 'internal scratch']
  %s0 = inlined_call_operand.vmem [shape: f32[32,108], index: 0, kind: input, shape index: {}]
  %s1 = inlined_call_operand.vmem [shape: bf16[108,128], index: 1, kind: input, shape index: {}]
  %s2 = inlined_call_operand.vmem [shape: f32[1,128], index: 2, kind: input, shape index: {}]
  %s3 = inlined_call_operand.vmem [shape: f32[32,128], index: 3, kind: input, shape index: {}]
  %s4 = inlined_call_operand.hbm [shape: f32[32,128], index: 4, kind: output, shape index: {}]
  %s5 = sld [smem:[#allocation0]]
  $region49: #{_forward_impl.1} parent=0
    _
  %s7 = ssub.s32 1, %s5
  %s8 = scalar_select 0, %s7, %s5
  $region1: #{_forward_impl.1} parent=0
    #allocation2 [shape = 'u8[16384]{0}', space=vmem, size = 0x4000, scoped, tag = 'output window, operand 0']
    #allocation3 [shape = 's32[2]{0}', space=sflag, size = 0x8, scoped, tag = 'scoped memory for _forward_impl.1']
    %9 = vsyncpa [#allocation3], 0
    %s10 = scalar_lea.sflag [#allocation3], 1
    %11 = vsyncpa %s10, 0
    loop: start=0, step=1, limit=4
    $region2: #{_forward_impl.1} parent=1 // loop_pre_header
      _
    $region3: #{_forward_impl.1} parent=1 // loop_header
      %s13 = sphi 0, %s17
      %p14 = scmp.ge.s32.totalorder %s13, 4
      %s23 = sphi 0, %s25
      %s26 = sphi 0, %s23
      %s27 = sphi 0, %s26
      %s43 = sphi 0, %s27
      %s47 = sphi 0, %s47
      %s49 = sphi 0, %s47
      %s50 = sphi 0, %s49
      %s64 = sphi 0, %s50
      %s68 = sphi 0, %s68
      %s70 = sphi 0, %s68
      %s71 = sphi 0, %s70
      %s85 = sphi 0, %s71
      %s91 = sphi 0, %s93
      %s94 = sphi 0, %s91
      %s95 = sphi 0, %s94
      %s111 = sphi 0, %s95
      %s117 = sphi 0, %s119
      %s120 = sphi 0, %s117
      %s121 = sphi 0, %s120
      %s137 = sphi 0, %s121
    $region4: #{_forward_impl.1} parent=1 // loop_header_branch
      %16 = sbr.rel (%p14) target = $region8
    $region5: #{_forward_impl.1} parent=1 // loop_body
      %s18 = ssub.s32 %s13, 1
      %s19 = ssub.s32 %s13, 2
      %s20 = sadd.s32 %s13, 1
      %s21 = ssub.s32 %s13, %s20
      %p22 = scmp.eq.s32.totalorder %s21, 0
      %s24 = sadd.s32 %s23, 1
      %s25 = scalar_select %p22, %s23, %s24
      %p28 = pneg %p22
      %p29 = scmp.eq.s32.totalorder %s13, 1
      %p30 = por %p28, %p29
      %p31 = scmp.ne.s32.totalorder %s23, %s26
      %p32 = scmp.eq.s32.totalorder %s13, 0
      %p33 = por %p31, %p32
      %p34 = scmp.ne.s32.totalorder %s23, %s26
      %p35 = scmp.eq.s32.totalorder %s18, 1
      %p36 = por %p34, %p35
      %p37 = scmp.ne.s32.totalorder %s26, %s27
      %p38 = scmp.eq.s32.totalorder %s18, 0
      %p39 = por %p37, %p38
      %p40 = scmp.ne.s32.totalorder %s26, %s27
      %p41 = scmp.eq.s32.totalorder %s19, 1
      %p42 = por %p40, %p41
      %p44 = scmp.ne.s32.totalorder %s27, %s43
      %p45 = scmp.eq.s32.totalorder %s19, 0
      %p46 = por %p44, %p45
      %s48 = sadd.s32 %s47, 1
      %p51 = scmp.eq.s32.totalorder %s13, 1
      %p52 = scmp.ne.s32.totalorder %s47, %s49
      %p53 = scmp.eq.s32.totalorder %s13, 0
      %p54 = por %p52, %p53
      %p55 = scmp.ne.s32.totalorder %s47, %s49
      %p56 = scmp.eq.s32.totalorder %s18, 1
      %p57 = por %p55, %p56
      %p58 = scmp.ne.s32.totalorder %s49, %s50
      %p59 = scmp.eq.s32.totalorder %s18, 0
      %p60 = por %p58, %p59
      %p61 = scmp.ne.s32.totalorder %s49, %s50
      %p62 = scmp.eq.s32.totalorder %s19, 1
      %p63 = por %p61, %p62
      %p65 = scmp.ne.s32.totalorder %s50, %s64
      %p66 = scmp.eq.s32.totalorder %s19, 0
      %p67 = por %p65, %p66
      %s69 = sadd.s32 %s68, 1
      %p72 = scmp.eq.s32.totalorder %s13, 1
      %p73 = scmp.ne.s32.totalorder %s68, %s70
      %p74 = scmp.eq.s32.totalorder %s13, 0
      %p75 = por %p73, %p74
      %p76 = scmp.ne.s32.totalorder %s68, %s70
      %p77 = scmp.eq.s32.totalorder %s18, 1
      %p78 = por %p76, %p77
      %p79 = scmp.ne.s32.totalorder %s70, %s71
      %p80 = scmp.eq.s32.totalorder %s18, 0
      %p81 = por %p79, %p80
      %p82 = scmp.ne.s32.totalorder %s70, %s71
      %p83 = scmp.eq.s32.totalorder %s19, 1
      %p84 = por %p82, %p83
      %p86 = scmp.ne.s32.totalorder %s71, %s85
      %p87 = scmp.eq.s32.totalorder %s19, 0
      %p88 = por %p86, %p87
      %s89 = ssub.s32 %s13, %s20
      %p90 = scmp.eq.s32.totalorder %s89, 0
      %s92 = sadd.s32 %s91, 1
      %s93 = scalar_select %p90, %s91, %s92
      %p96 = pneg %p90
      %p97 = scmp.eq.s32.totalorder %s13, 1
      %p98 = por %p96, %p97
      %p99 = scmp.ne.s32.totalorder %s91, %s94
      %p100 = scmp.eq.s32.totalorder %s13, 0
      %p101 = por %p99, %p100
      %p102 = scmp.ne.s32.totalorder %s91, %s94
      %p103 = scmp.eq.s32.totalorder %s18, 1
      %p104 = por %p102, %p103
      %p105 = scmp.ne.s32.totalorder %s94, %s95
      %p106 = scmp.eq.s32.totalorder %s18, 0
      %p107 = por %p105, %p106
      %p108 = scmp.ne.s32.totalorder %s94, %s95
      %p109 = scmp.eq.s32.totalorder %s19, 1
      %p110 = por %p108, %p109
      %p112 = scmp.ne.s32.totalorder %s95, %s111
      %p113 = scmp.eq.s32.totalorder %s19, 0
      %p114 = por %p112, %p113
      %s115 = ssub.s32 %s13, %s20
      %p116 = scmp.eq.s32.totalorder %s115, 0
      %s118 = sadd.s32 %s117, 1
      %s119 = scalar_select %p116, %s117, %s118
      %p122 = pneg %p116
      %p123 = scmp.eq.s32.totalorder %s13, 1
      %p124 = por %p122, %p123
      %p125 = scmp.ne.s32.totalorder %s117, %s120
      %p126 = scmp.eq.s32.totalorder %s13, 0
      %p127 = por %p125, %p126
      %p128 = scmp.ne.s32.totalorder %s117, %s120
      %p129 = scmp.eq.s32.totalorder %s18, 1
      %p130 = por %p128, %p129
      %p131 = scmp.ne.s32.totalorder %s120, %s121
      %p132 = scmp.eq.s32.totalorder %s18, 0
      %p133 = por %p131, %p132
      %p134 = scmp.ne.s32.totalorder %s120, %s121
      %p135 = scmp.eq.s32.totalorder %s19, 1
      %p136 = por %p134, %p135
      %p138 = scmp.ne.s32.totalorder %s121, %s137
      %p139 = scmp.eq.s32.totalorder %s19, 0
      %p140 = por %p138, %p139
      %p141 = scmp.le.s32.totalorder 1, %s13
      %p142 = scmp.lt.s32.totalorder %s13, 3
      %p143 = pnand %p141, %p142
      %p144 = pneg %p143
      // Predicated region
      $region9: #{_forward_impl.1} parent=5 // pred_check
        _
      $region10: #{_forward_impl.1} parent=5 // pred_check_branch
        %146 = sbr.rel (%p143) target = $region12
      $region11: #{_forward_impl.1} parent=5 // pred_region
        %s147 = ssub.s32 %s13, 1
        // Predicated region
        $region13: #{_forward_impl.1} parent=11 // pred_check
          %p148 = pneg %p60
        $region14: #{_forward_impl.1} parent=11 // pred_check_branch
          %150 = sbr.rel (%p148) target = $region16
        $region15: #{_forward_impl.1} parent=11 // pred_region
          _
        $region16: #{_forward_impl.1} parent=11 // pred_fallthru
          _
        // Predicated region
        $region17: #{_forward_impl.1} parent=11 // pred_check
          %p151 = pneg %p81
        $region18: #{_forward_impl.1} parent=11 // pred_check_branch
          %153 = sbr.rel (%p151) target = $region20
        $region19: #{_forward_impl.1} parent=11 // pred_region
          _
        $region20: #{_forward_impl.1} parent=11 // pred_fallthru
          _
      $region12: #{_forward_impl.1} parent=5 // pred_fallthru
        _
      %p154 = scmp.lt.s32.totalorder %s13, 2
      // Predicated region
      $region21: #{_forward_impl.1} parent=5 // pred_check
        %p155 = pneg %p154
      $region22: #{_forward_impl.1} parent=5 // pred_check_branch
        %157 = sbr.rel (%p155) target = $region24
      $region23: #{_forward_impl.1} parent=5 // pred_region
        // Predicated region
        $region25: #{_forward_impl.1} parent=23 // pred_check
          %p158 = pneg %p33
        $region26: #{_forward_impl.1} parent=23 // pred_check_branch
          %160 = sbr.rel (%p158) target = $region28
        $region27: #{_forward_impl.1} parent=23 // pred_region
          %s161 = smul.u32 2, %s13
          %p162 = scmp.lt.s32.totalorder %s161, 3
          %s163 = scalar_select %p162, %s161, 3
          %s164 = smul.addr %s163, 8
          %s165 = scalar_lea.vmem %s0, %s164
          %s166 = smul.u32 2, %s13
        $region28: #{_forward_impl.1} parent=23 // pred_fallthru
          _
        // Predicated region
        $region29: #{_forward_impl.1} parent=23 // pred_check
          %p167 = pneg %p101
        $region30: #{_forward_impl.1} parent=23 // pred_check_branch
          %169 = sbr.rel (%p167) target = $region32
        $region31: #{_forward_impl.1} parent=23 // pred_region
          %s170 = smul.u32 2, %s13
          %p171 = scmp.lt.s32.totalorder %s170, 3
          %s172 = scalar_select %p171, %s170, 3
          %s173 = smul.addr %s172, 8
          %s174 = scalar_lea.vmem %s3, %s173
          %s175 = smul.u32 2, %s13
        $region32: #{_forward_impl.1} parent=23 // pred_fallthru
          _
      $region24: #{_forward_impl.1} parent=5 // pred_fallthru
        _
      %p176 = scmp.le.s32.totalorder 1, %s13
      %p177 = scmp.lt.s32.totalorder %s13, 3
      %p178 = pnand %p176, %p177
      %p179 = pneg %p178
      // Predicated region
      $region33: #{_forward_impl.1} parent=5 // pred_check
        _
      $region34: #{_forward_impl.1} parent=5 // pred_check_branch
        %181 = sbr.rel (%p178) target = $region36
      $region35: #{_forward_impl.1} parent=5 // pred_region
        %s182 = ssub.s32 %s13, 1
        %s183 = smul.u32 2, %s18
        %p184 = scmp.lt.s32.totalorder %s183, 3
        %s185 = scalar_select %p184, %s183, 3
        %s186 = smul.addr %s185, 8
        %s187 = scalar_lea.vmem %s0, %s186
        %p188 = pneg %p39
        %p189 = pneg %p36
        %p190 = pneg %p60
        %p191 = pneg %p57
        %p192 = pneg %p81
        %p193 = pneg %p78
        %s194 = smul.u32 2, %s18
        %p195 = scmp.lt.s32.totalorder %s194, 3
        %s196 = scalar_select %p195, %s194, 3
        %s197 = smul.addr %s196, 8
        %s198 = scalar_lea.vmem %s3, %s197
        %p199 = pneg %p107
        %p200 = pneg %p104
        %p201 = pneg %p133
        %p202 = pneg %p130
        %s203 = sand.u32 %s120, 1
        %s204 = scalar_lea.sflag [#allocation3], %s203
        %s205 = sand.u32 %s120, 1
        %s206 = smul.addr %s205, 16
        %s207 = scalar_lea.vmem [#allocation2], %s206
        %s208 = smul.u32 2, %s18
        %p209 = scmp.lt.s32.totalorder %s208, 3
        %s210 = scalar_select %p209, %s208, 3
        %s211 = smul.addr %s210, 8
        %s212 = scalar_lea.vmem %s0, %s211
        %s213 = smul.u32 2, %s18
        %s214 = smul.u32 2, %s18
        %p215 = scmp.lt.s32.totalorder %s214, 3
        %s216 = scalar_select %p215, %s214, 3
        %s217 = smul.addr %s216, 8
        %s218 = scalar_lea.vmem %s3, %s217
        %s219 = smul.u32 2, %s18
        %s220 = smul.u32 2, %s18
        %v222 = vld [vmem:[%s212] sm:$0xff]
        %v223 = vld [vmem:[%s212 + $0x8] sm:$0xff]
        %v224 = vpack.c.bf16 %v223, %v222
        %v225 = vld [vmem:[%s1] sm:$0xf]
        %v226 = vld [vmem:[%s1 + $0x4] sm:$0xf]
        %v227 = vld [vmem:[%s1 + $0x8] sm:$0xf]
        %v228 = vld [vmem:[%s1 + $0xc] sm:$0xf]
        %v229 = vld [vmem:[%s1 + $0x10] sm:$0xf]
        %v230 = vld [vmem:[%s1 + $0x14] sm:$0xf]
        %v231 = vld [vmem:[%s1 + $0x18] sm:$0xf]
        %v232 = vld [vmem:[%s1 + $0x1c] sm:$0xf]
        %v233 = vld [vmem:[%s1 + $0x20] sm:$0xf]
        %v234 = vld [vmem:[%s1 + $0x24] sm:$0xf]
        %v235 = vld [vmem:[%s1 + $0x28] sm:$0xf]
        %v236 = vld [vmem:[%s1 + $0x2c] sm:$0xf]
        %v237 = vld [vmem:[%s1 + $0x30] sm:$0xf]
        %v238 = vld [vmem:[%s1 + $0x34] sm:$0x3]
        %v239 = vld [vmem:[%s218] sm:$0xff]
        %v240 = vld [vmem:[%s218 + $0x8] sm:$0xff]
        %v255 = vunpack.c.l.b16 %v225
        %v256 = vunpack.c.l.b16 %v226
        %v257 = vunpack.c.l.b16 %v227
        %v258 = vunpack.c.l.b16 %v228
        %v259 = vunpack.c.l.b16 %v229
        %v260 = vunpack.c.l.b16 %v230
        %v261 = vunpack.c.l.b16 %v231
        %v262 = vunpack.c.l.b16 %v232
        %v263 = vunpack.c.l.b16 %v233
        %v264 = vunpack.c.l.b16 %v234
        %v265 = vunpack.c.l.b16 %v235
        %v266 = vunpack.c.l.b16 %v236
        %v267 = vunpack.c.l.b16 %v237
        %v268 = vunpack.c.l.b16 %v238
        %v269 = vpack.c.b16 %v256, %v255
        %v270 = vpack.c.b16 %v258, %v257
        %v271 = vpack.c.b16 %v260, %v259
        %v272 = vpack.c.b16 %v262, %v261
        %v273 = vpack.c.b16 %v264, %v263
        %v274 = vpack.c.b16 %v266, %v265
        %v275 = vpack.c.b16 %v268, %v267
        %vm282 = vcmask 883712
        %v284 = vsel %vm282, %v224, 0
        %vm286 = vcmask 1045504
        %v288 = vsel %vm286, %v275, 0
        %290 = vmatprep.subr.bf16.mxu0 0
        %291 = vmatpush1.bf16.msra.mxu0 %v269
        %292 = vmatprep.subr.bf16.mxu0 0
        %293 = vmatpush1.bf16.msra.mxu0 %v270
        %294 = vmatprep.subr.bf16.mxu0 0
        %295 = vmatpush1.bf16.msra.mxu0 %v271
        %296 = vmatprep.subr.bf16.mxu0 0
        %297 = vmatpush1.bf16.msra.mxu0 %v272
        %298 = vmatprep.subr.bf16.mxu0 0
        %299 = vmatpush1.bf16.msra.mxu0 %v273
        %300 = vmatprep.subr.bf16.mxu0 0
        %301 = vmatpush1.bf16.msra.mxu0 %v274
        %302 = vmatprep.subr.bf16.mxu0 0
        %303 = vmatpush1.bf16.msra.mxu0 %v288
        %304 = vmatprep.subr.bf16.mxu0 0
        %305 = vmatpush1.bf16.msra.mxu0 0
        %306 = vmatprep.subr.bf16.mxu0 0
        %307 = vmatpush1.bf16.msra.mxu0 0
        %308 = vmatprep.subr.bf16.mxu0 0
        %309 = vmatpush1.bf16.msra.mxu0 0
        %310 = vmatprep.subr.bf16.mxu0 0
        %311 = vmatpush1.bf16.msra.mxu0 0
        %312 = vmatprep.subr.bf16.mxu0 0
        %313 = vmatpush1.bf16.msra.mxu0 0
        %314 = vmatprep.subr.bf16.mxu0 0
        %315 = vmatpush1.bf16.msra.mxu0 0
        %316 = vmatprep.subr.bf16.mxu0 0
        %317 = vmatpush1.bf16.msra.mxu0 0
        %318 = vmatprep.subr.bf16.mxu0 0
        %319 = vmatpush1.bf16.msra.mxu0 0
        %320 = vmatprep.subr.bf16.mxu0 0
        %321 = vmatpush1.bf16.msra.mxu0 0
        %322 = vmatprep.mubr.bf16.mxu0 0
        %323 = vmatmul.mubr.bf16.gmra.mrb[0].mxu0 %v284
        %v324 = vpop.f32.mrb[0].mxu0
        %v325 = vadd.f32 %v239, %v324
        %v326 = vpop.f32.mrb[0].mxu0
        %v327 = vpop.f32.mrb[0].mxu0
        %v328 = vadd.f32 %v240, %v327
        %v329 = vpop.f32.mrb[0].mxu0
        %330 = vdwg.mxu0
        %v331 = vld [vmem:[%s2] sm:$0x1]
        %v333 = vlaneseq
        %v334 = vshrl.u32 %v333, 7
        %v335 = vsub.s32 0, %v334
        %v336 = vrot.slane %v331, %v335
        %v338 = vadd.f32 %v325, %v336
        %v339 = vadd.f32 %v328, %v336
        %340 = vst [vmem:[%s207] sm:$0xff] %v338
        %341 = vst [vmem:[%s207 + $0x8] sm:$0xff] %v339
        %s342 = sand.u32 %s120, 1
        %s343 = scalar_lea.sflag [#allocation3], %s342
        %s344 = sand.u32 %s120, 1
        %s345 = smul.addr %s344, 16
        %s346 = scalar_lea.vmem [#allocation2], %s345
        // Predicated region
        $region37: #{_forward_impl.1} parent=35 // pred_check
          %p347 = pneg %p130
        $region38: #{_forward_impl.1} parent=35 // pred_check_branch
          %349 = sbr.rel (%p347) target = $region40
        $region39: #{_forward_impl.1} parent=35 // pred_region
          %s350 = smul.u32 2, %s18
          %s352 = ssub.s32 256, 256
          %353 = vsyncadd %s343, %s352
          %s354 = smul.addr %s350, 128
          %s355 = scalar_lea.hbm %s4, %s354
          %s356 = sshll.u32 %s346, 4
          %s357 = int_to_ptr.vmem [resolvable:$true] %s356
          %362 = dma.vmem_to_hbm [thread:$0]  %s357, 256, %s355, %s343, 128, 128, 8
        $region40: #{_forward_impl.1} parent=35 // pred_fallthru
          _
      $region36: #{_forward_impl.1} parent=5 // pred_fallthru
        _
      %p363 = scmp.le.s32.totalorder 2, %s13
      // Predicated region
      $region41: #{_forward_impl.1} parent=5 // pred_check
        %p364 = pneg %p363
      $region42: #{_forward_impl.1} parent=5 // pred_check_branch
        %366 = sbr.rel (%p364) target = $region44
      $region43: #{_forward_impl.1} parent=5 // pred_region
        %s367 = ssub.s32 %s13, 2
        // Predicated region
        $region45: #{_forward_impl.1} parent=43 // pred_check
          %p368 = pneg %p136
        $region46: #{_forward_impl.1} parent=43 // pred_check_branch
          %370 = sbr.rel (%p368) target = $region48
        $region47: #{_forward_impl.1} parent=43 // pred_region
          %s371 = sand.u32 %s121, 1
          %s372 = scalar_lea.sflag [#allocation3], %s371
          %s373 = sand.u32 %s121, 1
          %s374 = smul.addr %s373, 16
          %s375 = scalar_lea.vmem [#allocation2], %s374
          %376 = dma.done %s372, 256
        $region48: #{_forward_impl.1} parent=43 // pred_fallthru
          _
      $region44: #{_forward_impl.1} parent=5 // pred_fallthru
        _
    $region6: #{_forward_impl.1} parent=1 // loop_footer
      %s17 = sadd.s32 1, %s13
    $region7: #{_forward_impl.1} parent=1 // loop_footer_branch
      %12 = sbr.rel target = $region3
    $region8: #{_forward_impl.1} parent=1 // loop_exit
      _
    %377 = vsyncpa [#allocation3], 1
    %s378 = scalar_lea.sflag [#allocation3], 1
    %379 = vsyncpa %s378, 1

</llo_original>
